<compile_context>
chip_gen: v7x
topology: tpu7x:2x2x1
jax: 0.10.0
libtpu: 0.0.40
codegen_flags: <defaults>
</compile_context>

<pallas_src>
import jax
import jax.numpy as jnp
from jax import lax
from jax.experimental import pallas as pl
from jax.experimental.pallas import tpu as pltpu

_NEG_FILL = -1e30          # padded class lanes: exp(_NEG_FILL - m) == 0.0 in f32
_TF_CAP = 2048             # F-reduction tile cap (>=1024 ~86% of HBM roofline)
_TM_CAP = 256              # batch tile cap (v6e/v7x; set 128 if tuning for v5e)
_W_RESIDENT_BYTES = 12 * 1024 * 1024   # keep W fully VMEM-resident below this


def _round_up(x, m):
    return ((x + m - 1) // m) * m


def _cdiv(a, b):
    return -(-a // b)


def _make_kernel(*, tf, f_true, w_resident, needs_f_mask):
    """Fused: o = bias ; o += x @ W over F tiles ; o = softmax(o)."""

    def kernel(x_ref, w_ref, b_ref, o_ref):
        k = pl.program_id(1)          # F-reduction step (trailing, "arbitrary")

        @pl.when(k == 0)
        def _():
            # Bias (padded lanes = large negative) folded into the accumulator
            # init; o_ref (f32, block index constant in k) IS the accumulator.
            o_ref[...] = jnp.broadcast_to(b_ref[...], o_ref.shape)

        x = x_ref[...]                                 # f32 tile straight from HBM
        if needs_f_mask:
            # The last F tile extends past the true feature dim; OOB block
            # reads are undefined, so zero the tail before it hits the MXU.
            col = k * tf + lax.broadcasted_iota(jnp.int32, x.shape, 1)
            x = jnp.where(col < f_true, x, 0.0)
        x = x.astype(jnp.bfloat16)                     # VPU cast hides under DMA

        if w_resident:
            # W lives in VMEM as one block; slice the current F chunk.
            start = pl.multiple_of(k * tf, tf)
            w = w_ref[pl.ds(start, tf), :]
        else:
            w = w_ref[...]

        o_ref[...] += jnp.dot(x, w, preferred_element_type=jnp.float32)

        @pl.when(k == pl.num_programs(1) - 1)
        def _():
            logits = o_ref[...]                            # f32 (TM, TN)
            m = jnp.max(logits, axis=-1, keepdims=True)    # real lanes dominate
            e = jnp.exp(logits - m)                        # padded lanes -> 0
            denom = jnp.sum(e, axis=-1, keepdims=True)
            o_ref[...] = e / denom       # exact normalize: once per batch tile

    return kernel


def prepare_wrapper_params(weight, bias):
    """One-time (model-init) padding + bf16 cast of the static Linear params.

    weight : [F, K] f32 ([in, out] layout)
    bias   : [K]    f32
    """
    F, K = weight.shape
    K_pad = _round_up(K, 128)                 # lane-dense classes (single N tile)
    TF = _round_up(F, 128)
    if TF > _TF_CAP:
        TF = _TF_CAP
    F_pad = _round_up(F, TF)

    w_p = jnp.zeros((F_pad, K_pad), jnp.bfloat16)
    w_p = w_p.at[:F, :K].set(weight.astype(jnp.bfloat16))
    b_p = jnp.full((1, K_pad), _NEG_FILL, dtype=jnp.float32)
    b_p = b_p.at[0, :K].set(bias.astype(jnp.float32))
    return {"w": w_p, "b": b_p, "tf": TF, "num_classes": K, "num_features": F}


def wrapper_forward(x_nchw, params):
    """softmax(Linear(flatten(x)), dim=1) -> [B, K] f32."""
    w_p, b_p = params["w"], params["b"]
    TF, K, F = params["tf"], params["num_classes"], params["num_features"]

    B = x_nchw.shape[0]
    x_flat = x_nchw.reshape(B, -1)            # torch.flatten(x, 1) row order
    assert x_flat.shape[1] == F, "feature dim mismatch with prepared params"

    F_pad, K_pad = w_p.shape
    TN = K_pad                                # single N tile: softmax stays in-block

    # ---- batch tiling ------------------------------------------------------
    if B < 32:
        TM = B                                # full-dim block: no batch padding
    else:
        # >=2 tiles on the "parallel" axis so v7x's 2nd TensorCore has work;
        # multiple of 16 for bf16 sublane packing of the cast tile.
        TM = min(_TM_CAP, _round_up(_cdiv(B, 2), 16))
    num_m = _cdiv(B, TM)
    num_k = F_pad // TF

    # ---- W residency & F-tail masking (static config) ----------------------
    w_bytes = F_pad * K_pad * 2
    w_resident = (num_k > 1) and (w_bytes <= _W_RESIDENT_BYTES)
    needs_f_mask = (F % TF) != 0

    kernel = _make_kernel(
        tf=TF, f_true=F, w_resident=w_resident, needs_f_mask=needs_f_mask
    )

    if w_resident:
        # Single DMA; stays in VMEM across all batch tiles (no re-stream).
        w_spec = pl.BlockSpec((F_pad, K_pad), lambda m, k: (0, 0))
        w_hbm_reads = w_bytes
    else:
        w_spec = pl.BlockSpec((TF, K_pad), lambda m, k: (k, 0))
        w_hbm_reads = w_bytes * num_m

    cost = pl.CostEstimate(
        flops=2 * B * F * K_pad,
        transcendentals=B * K_pad,
        bytes_accessed=4 * B * F + w_hbm_reads + 4 * K_pad + 4 * B * K_pad,
    )

    out = pl.pallas_call(
        kernel,
        out_shape=jax.ShapeDtypeStruct((B, K_pad), jnp.float32),
        grid=(num_m, num_k),                  # (batch tiles, F-reduction steps)
        in_specs=[
            pl.BlockSpec((TM, TF), lambda m, k: (m, k)),   # x tile (f32, streamed once)
            w_spec,                                        # W (resident or streamed)
            pl.BlockSpec((1, TN), lambda m, k: (0, 0)),    # bias (resident)
        ],
        out_specs=pl.BlockSpec((TM, TN), lambda m, k: (m, 0)),   # f32 accumulator
        compiler_params=pltpu.CompilerParams(
            dimension_semantics=("parallel", "arbitrary"),
        ),
        cost_estimate=cost,
    )(x_flat, w_p, b_p)

    return out[:, :K]


if __name__ == "__main__":
    key = jax.random.PRNGKey(0)
    k_x, k_w, k_b = jax.random.split(key, 3)

    B, C, H, W = 2, 4, 16, 16                 # NCHW input
    F = C * H * W                             # 1024 flattened features
    K = 16                                    # num classes (softmax dim=1)

    x = jax.random.normal(k_x, (B, C, H, W), dtype=jnp.float32)
    weight = jax.random.normal(k_w, (F, K), dtype=jnp.float32) * 0.02
    bias = jax.random.normal(k_b, (K,), dtype=jnp.float32) * 0.01

    # One-time parameter preparation (model init), reused across forwards.
    params = prepare_wrapper_params(weight, bias)

    out = jax.block_until_ready(wrapper_forward(x, params))

    # Reference in f32; tolerance loosened for the bf16 matmul streams
    # (documented accuracy trade-off of the bf16 MXU path).
    ref = jax.nn.softmax(x.reshape(B, F) @ weight + bias, axis=1)
    assert out.shape == (B, K)
    assert jnp.allclose(out, ref, atol=5e-3, rtol=5e-3), float(
        jnp.max(jnp.abs(out - ref))
    )
    # Exact divide in the epilogue -> rows sum to 1 up to f32 rounding.
    assert jnp.allclose(jnp.sum(out, axis=1), jnp.ones((B,)), atol=1e-4)

    print("KERNEL_OK")
</pallas_src>

<mosaic_0001>
module attributes {stable_mosaic.version = 11 : i64} {
  func.func @kernel(%arg0: i32, %arg1: i32, %arg2: memref<2x1024xf32, #tpu.memory_space<vmem>>, %arg3: memref<1024x128xbf16, #tpu.memory_space<vmem>>, %arg4: memref<1x128xf32, #tpu.memory_space<vmem>>, %arg5: memref<2x128xf32, #tpu.memory_space<vmem>>) attributes {dimension_semantics = [#tpu.dimension_semantics<parallel>, #tpu.dimension_semantics<arbitrary>], iteration_bounds = array<i64: 1, 1>, scalar_prefetch = 0 : i64, scratch_operands = 0 : i64, tpu.core_type = #tpu.core_type<tc>, window_params = [{transform_indices = @transform_0, window_bounds = array<i64: 2, 1024>}, {transform_indices = @transform_1, window_bounds = array<i64: 1024, 128>}, {pipeline_mode = #tpu.pipeline_mode<synchronous>, transform_indices = @transform_2, window_bounds = array<i64: 1, 128>}, {transform_indices = @transform_3, window_bounds = array<i64: 2, 128>}]} {
    %c0_i32 = arith.constant 0 : i32
    %0 = arith.cmpi eq, %arg1, %c0_i32 : i32
    %1 = arith.extui %0 : i1 to i32
    %c0_i32_0 = arith.constant 0 : i32
    %2 = arith.cmpi ne, %1, %c0_i32_0 : i32
    scf.if %2 {
      %c0_10 = arith.constant 0 : index
      %c0_11 = arith.constant 0 : index
      %13 = vector.load %arg4[%c0_10, %c0_11] : memref<1x128xf32, #tpu.memory_space<vmem>>, vector<1x128xf32>
      %14 = vector.shape_cast %13 : vector<1x128xf32> to vector<1x128xf32>
      %15 = vector.broadcast %14 : vector<1x128xf32> to vector<2x128xf32>
      %c0_12 = arith.constant 0 : index
      %c0_13 = arith.constant 0 : index
      %16 = vector.load %arg5[%c0_12, %c0_13] : memref<2x128xf32, #tpu.memory_space<vmem>>, vector<2x128xf32>
      tpu.vector_store %arg5[%c0_12, %c0_13], %15 {strides = array<i32>} : memref<2x128xf32, #tpu.memory_space<vmem>>, vector<2x128xf32>,
    } else {
    }
    %c0 = arith.constant 0 : index
    %c0_1 = arith.constant 0 : index
    %3 = vector.load %arg2[%c0, %c0_1] : memref<2x1024xf32, #tpu.memory_space<vmem>>, vector<2x1024xf32>
    %4 = arith.truncf %3 : vector<2x1024xf32> to vector<2x1024xbf16>
    %c0_2 = arith.constant 0 : index
    %c0_3 = arith.constant 0 : index
    %5 = vector.load %arg3[%c0_2, %c0_3] : memref<1024x128xbf16, #tpu.memory_space<vmem>>, vector<1024x128xbf16>
    %c0_4 = arith.constant 0 : index
    %c0_5 = arith.constant 0 : index
    %6 = vector.load %arg5[%c0_4, %c0_5] : memref<2x128xf32, #tpu.memory_space<vmem>>, vector<2x128xf32>
    %cst = arith.constant dense<0.000000e+00> : vector<2x128xf32>
    %7 = tpu.matmul %4, %5, %cst {dimension_numbers = #tpu.dot_dimension_numbers<[1], [0], [0], [1], [0, 0, 1, 1], [], []>} : vector<2x1024xbf16>, vector<1024x128xbf16>, vector<2x128xf32> -> vector<2x128xf32>
    %8 = arith.addf %6, %7 : vector<2x128xf32>
    %c0_6 = arith.constant 0 : index
    %c0_7 = arith.constant 0 : index
    %9 = vector.load %arg5[%c0_6, %c0_7] : memref<2x128xf32, #tpu.memory_space<vmem>>, vector<2x128xf32>
    tpu.vector_store %arg5[%c0_6, %c0_7], %8 {strides = array<i32>} : memref<2x128xf32, #tpu.memory_space<vmem>>, vector<2x128xf32>,
    %c0_i32_8 = arith.constant 0 : i32
    %10 = arith.cmpi eq, %arg1, %c0_i32_8 : i32
    %11 = arith.extui %10 : i1 to i32
    %c0_i32_9 = arith.constant 0 : i32
    %12 = arith.cmpi ne, %11, %c0_i32_9 : i32
    scf.if %12 {
      %c0_10 = arith.constant 0 : index
      %c0_11 = arith.constant 0 : index
      %13 = vector.load %arg5[%c0_10, %c0_11] : memref<2x128xf32, #tpu.memory_space<vmem>>, vector<2x128xf32>
      %cst_12 = arith.constant dense<0xFF800000> : vector<2xf32>
      %14 = vector.multi_reduction <maximumf>, %13, %cst_12 [1] : vector<2x128xf32> to vector<2xf32>
      %15 = vector.shape_cast %14 : vector<2xf32> to vector<2x1xf32>
      %16 = vector.broadcast %15 : vector<2x1xf32> to vector<2x128xf32>
      %17 = arith.subf %13, %16 : vector<2x128xf32>
      %18 = math.exp %17 : vector<2x128xf32>
      %cst_13 = arith.constant dense<0.000000e+00> : vector<2xf32>
      %19 = vector.multi_reduction <add>, %18, %cst_13 [1] : vector<2x128xf32> to vector<2xf32>
      %20 = vector.shape_cast %19 : vector<2xf32> to vector<2x1xf32>
      %21 = vector.broadcast %20 : vector<2x1xf32> to vector<2x128xf32>
      %22 = arith.divf %18, %21 : vector<2x128xf32>
      %c0_14 = arith.constant 0 : index
      %c0_15 = arith.constant 0 : index
      %23 = vector.load %arg5[%c0_14, %c0_15] : memref<2x128xf32, #tpu.memory_space<vmem>>, vector<2x128xf32>
      tpu.vector_store %arg5[%c0_14, %c0_15], %22 {strides = array<i32>} : memref<2x128xf32, #tpu.memory_space<vmem>>, vector<2x128xf32>,
    } else {
    }
    return
  }
  func.func @transform_0(%arg0: i32, %arg1: i32) -> (i32, i32) {
    %c0_i32 = arith.constant 0 : i32
    return %arg0, %arg1 : i32, i32
  }
  func.func @transform_1(%arg0: i32, %arg1: i32) -> (i32, i32) {
    %c0_i32 = arith.constant 0 : i32
    %c0_i32_0 = arith.constant 0 : i32
    return %arg1, %c0_i32 : i32, i32
  }
  func.func @transform_2(%arg0: i32, %arg1: i32) -> (i32, i32) {
    %c0_i32 = arith.constant 0 : i32
    %c0_i32_0 = arith.constant 0 : i32
    %c0_i32_1 = arith.constant 0 : i32
    return %c0_i32, %c0_i32_0 : i32, i32
  }
  func.func @transform_3(%arg0: i32, %arg1: i32) -> (i32, i32) {
    %c0_i32 = arith.constant 0 : i32
    %c0_i32_0 = arith.constant 0 : i32
    return %arg0, %c0_i32 : i32, i32
  }
}

</mosaic_0001>

<llo_original>
// kernel: tpu_custom_call.1
$region0: #{tpu_custom_call.1}
  #allocation0 [shape = 'u32[]', space=smem, size = 0x4, offset = 0x4, fixed_abs, tag = 'smem constant byte address 0x4 - core index']
  #allocation1 [shape = 'u32[144,128]{1,0:T(1,128)}', space=vmem, size = 0x12000, scoped, tag = 'internal scratch']
  %s0 = inlined_call_operand.hbm [shape: f32[2,1024], index: 0, kind: input, shape index: {}]
  %s1 = inlined_call_operand.hbm [shape: bf16[1024,128], index: 1, kind: input, shape index: {}]
  %s2 = inlined_call_operand.vmem [shape: f32[1,128], index: 2, kind: input, shape index: {}]
  %s3 = inlined_call_operand.hbm [shape: f32[2,128], index: 3, kind: output, shape index: {}]
  %s4 = sld [smem:[#allocation0]]
  $region38: #{tpu_custom_call.1} parent=0
    _
  %s6 = ssub.s32 1, %s4
  %s7 = scalar_select 0, %s6, %s4
  $region1: #{tpu_custom_call.1} parent=0
    #allocation2 [shape = 'u8[8192]{0}', space=vmem, size = 0x2000, scoped, tag = 'input window, operand 0, single buffered']
    #allocation3 [shape = 's32[1]{0}', space=sflag, size = 0x4, scoped, tag = 'scoped memory for tpu_custom_call.1']
    #allocation4 [shape = 's32[1]{0}', space=sflag, size = 0x4, scoped, tag = 'scoped memory for tpu_custom_call.1']
    #allocation5 [shape = 'u8[262144]{0}', space=vmem, size = 0x40000, scoped, tag = 'input window, operand 1, single buffered']
    #allocation6 [shape = 's32[1]{0}', space=sflag, size = 0x4, scoped, tag = 'scoped memory for tpu_custom_call.1']
    #allocation7 [shape = 'u8[1024]{0}', space=vmem, size = 0x400, scoped, tag = 'output window, operand 0, single buffered']
    %8 = vsyncpa [#allocation3], 0
    %9 = vsyncpa [#allocation6], 0
    %10 = vsyncpa [#allocation4], 0
    // Predicated region
    $region2: #{tpu_custom_call.1} parent=1 // pred_check
      _
    $region3: #{tpu_custom_call.1} parent=1 // pred_check_branch
      %12 = sbr.rel (0) target = $region5
    $region4: #{tpu_custom_call.1} parent=1 // pred_region
      %s14 = ssub.s32 256, 256
      %15 = vsyncadd [#allocation3], %s14
      %s17 = sshll.u32 [#allocation2], 4
      %s18 = int_to_ptr.vmem [resolvable:$true] %s17
      %20 = dma.hbm_to_vmem [thread:$0]  %s0, 256, %s18, [#allocation3]
    $region5: #{tpu_custom_call.1} parent=1 // pred_fallthru
      _
    // Predicated region
    $region6: #{tpu_custom_call.1} parent=1 // pred_check
      _
    $region7: #{tpu_custom_call.1} parent=1 // pred_check_branch
      %22 = sbr.rel (0) target = $region9
    $region8: #{tpu_custom_call.1} parent=1 // pred_region
      %s24 = ssub.s32 8192, 8192
      %25 = vsyncadd [#allocation6], %s24
      %s26 = sshll.u32 [#allocation5], 4
      %s27 = int_to_ptr.vmem [resolvable:$true] %s26
      %32 = dma.hbm_to_vmem [thread:$0]  %s1, 8192, %s27, [#allocation6], 64, 64, 4
    $region9: #{tpu_custom_call.1} parent=1 // pred_fallthru
      _
    // Predicated region
    $region10: #{tpu_custom_call.1} parent=1 // pred_check
      _
    $region11: #{tpu_custom_call.1} parent=1 // pred_check_branch
      %34 = sbr.rel (0) target = $region13
    $region12: #{tpu_custom_call.1} parent=1 // pred_region
      _
    $region13: #{tpu_custom_call.1} parent=1 // pred_fallthru
      _
    // Predicated region
    $region14: #{tpu_custom_call.1} parent=1 // pred_check
      _
    $region15: #{tpu_custom_call.1} parent=1 // pred_check_branch
      %36 = sbr.rel (0) target = $region17
    $region16: #{tpu_custom_call.1} parent=1 // pred_region
      %37 = dma.done [#allocation3], 256
    $region17: #{tpu_custom_call.1} parent=1 // pred_fallthru
      _
    // Predicated region
    $region18: #{tpu_custom_call.1} parent=1 // pred_check
      _
    $region19: #{tpu_custom_call.1} parent=1 // pred_check_branch
      %39 = sbr.rel (0) target = $region21
    $region20: #{tpu_custom_call.1} parent=1 // pred_region
      %40 = dma.done [#allocation6], 8192
    $region21: #{tpu_custom_call.1} parent=1 // pred_fallthru
      _
    %p42 = scmp.eq.s32.totalorder 0, 0
    // Predicated region
    $region22: #{tpu_custom_call.1} parent=1 // pred_check
      %p43 = pneg %p42
    $region23: #{tpu_custom_call.1} parent=1 // pred_check_branch
      %45 = sbr.rel (%p43) target = $region25
    $region24: #{tpu_custom_call.1} parent=1 // pred_region
      %v46 = vld [vmem:[%s2] sm:$0x1]
      %v48 = vlaneseq
      %v49 = vshrl.u32 %v48, 7
      %v50 = vsub.s32 0, %v49
      %v51 = vrot.slane %v46, %v50
      %53 = vst [vmem:[#allocation7] sm:$0x3] %v51
    $region25: #{tpu_custom_call.1} parent=1 // pred_fallthru
      _
    %v54 = vld [vmem:[#allocation2] sm:$0xff]
    %v55 = vld [vmem:[#allocation2 + $0x8] sm:$0xff]
    %v58 = vcombine.high %v54, %v54
    %v60 = vunpack.c.l.s4 1983009808
    %v61 = vunpack.c.0.s8 %v60
    %v62 = vlaneseq
    %v63 = vshrl.u32 %v62, 7
    %v64 = vsub.s32 %v61, %v63
    %v65 = vrot.slane %v54, %v64
    %v67 = vunpack.c.l.s4 1983009808
    %v68 = vunpack.c.0.s8 %v67
    %v69 = vlaneseq
    %v70 = vshrl.u32 %v69, 7
    %v71 = vsub.s32 %v68, %v70
    %v72 = vrot.slane %v58, %v71
    %v73 = vcombine.high %v65, %v65
    %v74 = vcombine.high %v72, %v72
    %v75 = vcombine.high %v55, %v55
    %v77 = vunpack.c.l.s4 1983009808
    %v78 = vunpack.c.0.s8 %v77
    %v79 = vlaneseq
    %v80 = vshrl.u32 %v79, 7
    %v81 = vsub.s32 %v78, %v80
    %v82 = vrot.slane %v55, %v81
    %v84 = vunpack.c.l.s4 1983009808
    %v85 = vunpack.c.0.s8 %v84
    %v86 = vlaneseq
    %v87 = vshrl.u32 %v86, 7
    %v88 = vsub.s32 %v85, %v87
    %v89 = vrot.slane %v75, %v88
    %v90 = vcombine.high %v82, %v82
    %v91 = vcombine.high %v89, %v89
    %v100 = vpack.c.bf16 %v65, %v65
    %v101 = vpack.c.bf16 %v73, %v73
    %v102 = vpack.c.bf16 %v72, %v72
    %v103 = vpack.c.bf16 %v74, %v74
    %v104 = vpack.c.bf16 %v82, %v82
    %v105 = vpack.c.bf16 %v90, %v90
    %v106 = vpack.c.bf16 %v89, %v89
    %v107 = vpack.c.bf16 %v91, %v91
    %v108 = vld [vmem:[#allocation5] sm:$0xf]
    %v109 = vld [vmem:[#allocation5 + $0x4] sm:$0xf]
    %v110 = vld [vmem:[#allocation5 + $0x8] sm:$0xf]
    %v111 = vld [vmem:[#allocation5 + $0xc] sm:$0xf]
    %v112 = vld [vmem:[#allocation5 + $0x10] sm:$0xf]
    %v113 = vld [vmem:[#allocation5 + $0x14] sm:$0xf]
    %v114 = vld [vmem:[#allocation5 + $0x18] sm:$0xf]
    %v115 = vld [vmem:[#allocation5 + $0x1c] sm:$0xf]
    %v116 = vld [vmem:[#allocation5 + $0x20] sm:$0xf]
    %v117 = vld [vmem:[#allocation5 + $0x24] sm:$0xf]
    %v118 = vld [vmem:[#allocation5 + $0x28] sm:$0xf]
    %v119 = vld [vmem:[#allocation5 + $0x2c] sm:$0xf]
    %v120 = vld [vmem:[#allocation5 + $0x30] sm:$0xf]
    %v121 = vld [vmem:[#allocation5 + $0x34] sm:$0xf]
    %v122 = vld [vmem:[#allocation5 + $0x38] sm:$0xf]
    %v123 = vld [vmem:[#allocation5 + $0x3c] sm:$0xf]
    %v124 = vld [vmem:[#allocation5 + $0x40] sm:$0xf]
    %v125 = vld [vmem:[#allocation5 + $0x44] sm:$0xf]
    %v126 = vld [vmem:[#allocation5 + $0x48] sm:$0xf]
    %v127 = vld [vmem:[#allocation5 + $0x4c] sm:$0xf]
    %v128 = vld [vmem:[#allocation5 + $0x50] sm:$0xf]
    %v129 = vld [vmem:[#allocation5 + $0x54] sm:$0xf]
    %v130 = vld [vmem:[#allocation5 + $0x58] sm:$0xf]
    %v131 = vld [vmem:[#allocation5 + $0x5c] sm:$0xf]
    %v132 = vld [vmem:[#allocation5 + $0x60] sm:$0xf]
    %v133 = vld [vmem:[#allocation5 + $0x64] sm:$0xf]
    %v134 = vld [vmem:[#allocation5 + $0x68] sm:$0xf]
    %v135 = vld [vmem:[#allocation5 + $0x6c] sm:$0xf]
    %v136 = vld [vmem:[#allocation5 + $0x70] sm:$0xf]
    %v137 = vld [vmem:[#allocation5 + $0x74] sm:$0xf]
    %v138 = vld [vmem:[#allocation5 + $0x78] sm:$0xf]
    %v139 = vld [vmem:[#allocation5 + $0x7c] sm:$0xf]
    %v140 = vld [vmem:[#allocation5 + $0x80] sm:$0xf]
    %v141 = vld [vmem:[#allocation5 + $0x84] sm:$0xf]
    %v142 = vld [vmem:[#allocation5 + $0x88] sm:$0xf]
    %v143 = vld [vmem:[#allocation5 + $0x8c] sm:$0xf]
    %v144 = vld [vmem:[#allocation5 + $0x90] sm:$0xf]
    %v145 = vld [vmem:[#allocation5 + $0x94] sm:$0xf]
    %v146 = vld [vmem:[#allocation5 + $0x98] sm:$0xf]
    %v147 = vld [vmem:[#allocation5 + $0x9c] sm:$0xf]
    %v148 = vld [vmem:[#allocation5 + $0xa0] sm:$0xf]
    %v149 = vld [vmem:[#allocation5 + $0xa4] sm:$0xf]
    %v150 = vld [vmem:[#allocation5 + $0xa8] sm:$0xf]
    %v151 = vld [vmem:[#allocation5 + $0xac] sm:$0xf]
    %v152 = vld [vmem:[#allocation5 + $0xb0] sm:$0xf]
    %v153 = vld [vmem:[#allocation5 + $0xb4] sm:$0xf]
    %v154 = vld [vmem:[#allocation5 + $0xb8] sm:$0xf]
    %v155 = vld [vmem:[#allocation5 + $0xbc] sm:$0xf]
    %v156 = vld [vmem:[#allocation5 + $0xc0] sm:$0xf]
    %v157 = vld [vmem:[#allocation5 + $0xc4] sm:$0xf]
    %v158 = vld [vmem:[#allocation5 + $0xc8] sm:$0xf]
    %v159 = vld [vmem:[#allocation5 + $0xcc] sm:$0xf]
    %v160 = vld [vmem:[#allocation5 + $0xd0] sm:$0xf]
    %v161 = vld [vmem:[#allocation5 + $0xd4] sm:$0xf]
    %v162 = vld [vmem:[#allocation5 + $0xd8] sm:$0xf]
    %v163 = vld [vmem:[#allocation5 + $0xdc] sm:$0xf]
    %v164 = vld [vmem:[#allocation5 + $0xe0] sm:$0xf]
    %v165 = vld [vmem:[#allocation5 + $0xe4] sm:$0xf]
    %v166 = vld [vmem:[#allocation5 + $0xe8] sm:$0xf]
    %v167 = vld [vmem:[#allocation5 + $0xec] sm:$0xf]
    %v168 = vld [vmem:[#allocation5 + $0xf0] sm:$0xf]
    %v169 = vld [vmem:[#allocation5 + $0xf4] sm:$0xf]
    %v170 = vld [vmem:[#allocation5 + $0xf8] sm:$0xf]
    %v171 = vld [vmem:[#allocation5 + $0xfc] sm:$0xf]
    %v172 = vld [vmem:[#allocation5 + $0x100] sm:$0xf]
    %v173 = vld [vmem:[#allocation5 + $0x104] sm:$0xf]
    %v174 = vld [vmem:[#allocation5 + $0x108] sm:$0xf]
    %v175 = vld [vmem:[#allocation5 + $0x10c] sm:$0xf]
    %v176 = vld [vmem:[#allocation5 + $0x110] sm:$0xf]
    %v177 = vld [vmem:[#allocation5 + $0x114] sm:$0xf]
    %v178 = vld [vmem:[#allocation5 + $0x118] sm:$0xf]
    %v179 = vld [vmem:[#allocation5 + $0x11c] sm:$0xf]
    %v180 = vld [vmem:[#allocation5 + $0x120] sm:$0xf]
    %v181 = vld [vmem:[#allocation5 + $0x124] sm:$0xf]
    %v182 = vld [vmem:[#allocation5 + $0x128] sm:$0xf]
    %v183 = vld [vmem:[#allocation5 + $0x12c] sm:$0xf]
    %v184 = vld [vmem:[#allocation5 + $0x130] sm:$0xf]
    %v185 = vld [vmem:[#allocation5 + $0x134] sm:$0xf]
    %v186 = vld [vmem:[#allocation5 + $0x138] sm:$0xf]
    %v187 = vld [vmem:[#allocation5 + $0x13c] sm:$0xf]
    %v188 = vld [vmem:[#allocation5 + $0x140] sm:$0xf]
    %v189 = vld [vmem:[#allocation5 + $0x144] sm:$0xf]
    %v190 = vld [vmem:[#allocation5 + $0x148] sm:$0xf]
    %v191 = vld [vmem:[#allocation5 + $0x14c] sm:$0xf]
    %v192 = vld [vmem:[#allocation5 + $0x150] sm:$0xf]
    %v193 = vld [vmem:[#allocation5 + $0x154] sm:$0xf]
    %v194 = vld [vmem:[#allocation5 + $0x158] sm:$0xf]
    %v195 = vld [vmem:[#allocation5 + $0x15c] sm:$0xf]
    %v196 = vld [vmem:[#allocation5 + $0x160] sm:$0xf]
    %v197 = vld [vmem:[#allocation5 + $0x164] sm:$0xf]
    %v198 = vld [vmem:[#allocation5 + $0x168] sm:$0xf]
    %v199 = vld [vmem:[#allocation5 + $0x16c] sm:$0xf]
    %v200 = vld [vmem:[#allocation5 + $0x170] sm:$0xf]
    %v201 = vld [vmem:[#allocation5 + $0x174] sm:$0xf]
    %v202 = vld [vmem:[#allocation5 + $0x178] sm:$0xf]
    %v203 = vld [vmem:[#allocation5 + $0x17c] sm:$0xf]
    %v204 = vld [vmem:[#allocation5 + $0x180] sm:$0xf]
    %v205 = vld [vmem:[#allocation5 + $0x184] sm:$0xf]
    %v206 = vld [vmem:[#allocation5 + $0x188] sm:$0xf]
    %v207 = vld [vmem:[#allocation5 + $0x18c] sm:$0xf]
    %v208 = vld [vmem:[#allocation5 + $0x190] sm:$0xf]
    %v209 = vld [vmem:[#allocation5 + $0x194] sm:$0xf]
    %v210 = vld [vmem:[#allocation5 + $0x198] sm:$0xf]
    %v211 = vld [vmem:[#allocation5 + $0x19c] sm:$0xf]
    %v212 = vld [vmem:[#allocation5 + $0x1a0] sm:$0xf]
    %v213 = vld [vmem:[#allocation5 + $0x1a4] sm:$0xf]
    %v214 = vld [vmem:[#allocation5 + $0x1a8] sm:$0xf]
    %v215 = vld [vmem:[#allocation5 + $0x1ac] sm:$0xf]
    %v216 = vld [vmem:[#allocation5 + $0x1b0] sm:$0xf]
    %v217 = vld [vmem:[#allocation5 + $0x1b4] sm:$0xf]
    %v218 = vld [vmem:[#allocation5 + $0x1b8] sm:$0xf]
    %v219 = vld [vmem:[#allocation5 + $0x1bc] sm:$0xf]
    %v220 = vld [vmem:[#allocation5 + $0x1c0] sm:$0xf]
    %v221 = vld [vmem:[#allocation5 + $0x1c4] sm:$0xf]
    %v222 = vld [vmem:[#allocation5 + $0x1c8] sm:$0xf]
    %v223 = vld [vmem:[#allocation5 + $0x1cc] sm:$0xf]
    %v224 = vld [vmem:[#allocation5 + $0x1d0] sm:$0xf]
    %v225 = vld [vmem:[#allocation5 + $0x1d4] sm:$0xf]
    %v226 = vld [vmem:[#allocation5 + $0x1d8] sm:$0xf]
    %v227 = vld [vmem:[#allocation5 + $0x1dc] sm:$0xf]
    %v228 = vld [vmem:[#allocation5 + $0x1e0] sm:$0xf]
    %v229 = vld [vmem:[#allocation5 + $0x1e4] sm:$0xf]
    %v230 = vld [vmem:[#allocation5 + $0x1e8] sm:$0xf]
    %v231 = vld [vmem:[#allocation5 + $0x1ec] sm:$0xf]
    %v232 = vld [vmem:[#allocation5 + $0x1f0] sm:$0xf]
    %v233 = vld [vmem:[#allocation5 + $0x1f4] sm:$0xf]
    %v234 = vld [vmem:[#allocation5 + $0x1f8] sm:$0xf]
    %v235 = vld [vmem:[#allocation5 + $0x1fc] sm:$0xf]
    %v236 = vld [vmem:[#allocation7] sm:$0x3]
    %v365 = vunpack.c.l.b16 %v108
    %v366 = vunpack.c.l.b16 %v109
    %v367 = vunpack.c.l.b16 %v110
    %v368 = vunpack.c.l.b16 %v111
    %v369 = vunpack.c.l.b16 %v112
    %v370 = vunpack.c.l.b16 %v113
    %v371 = vunpack.c.l.b16 %v114
    %v372 = vunpack.c.l.b16 %v115
    %v373 = vunpack.c.l.b16 %v116
    %v374 = vunpack.c.l.b16 %v117
    %v375 = vunpack.c.l.b16 %v118
    %v376 = vunpack.c.l.b16 %v119
    %v377 = vunpack.c.l.b16 %v120
    %v378 = vunpack.c.l.b16 %v121
    %v379 = vunpack.c.l.b16 %v122
    %v380 = vunpack.c.l.b16 %v123
    %v381 = vunpack.c.l.b16 %v124
    %v382 = vunpack.c.l.b16 %v125
    %v383 = vunpack.c.l.b16 %v126
    %v384 = vunpack.c.l.b16 %v127
    %v385 = vunpack.c.l.b16 %v128
    %v386 = vunpack.c.l.b16 %v129
    %v387 = vunpack.c.l.b16 %v130
    %v388 = vunpack.c.l.b16 %v131
    %v389 = vunpack.c.l.b16 %v132
    %v390 = vunpack.c.l.b16 %v133
    %v391 = vunpack.c.l.b16 %v134
    %v392 = vunpack.c.l.b16 %v135
    %v393 = vunpack.c.l.b16 %v136
    %v394 = vunpack.c.l.b16 %v137
    %v395 = vunpack.c.l.b16 %v138
    %v396 = vunpack.c.l.b16 %v139
    %v397 = vunpack.c.l.b16 %v140
    %v398 = vunpack.c.l.b16 %v141
    %v399 = vunpack.c.l.b16 %v142
    %v400 = vunpack.c.l.b16 %v143
    %v401 = vunpack.c.l.b16 %v144
    %v402 = vunpack.c.l.b16 %v145
    %v403 = vunpack.c.l.b16 %v146
    %v404 = vunpack.c.l.b16 %v147
    %v405 = vunpack.c.l.b16 %v148
    %v406 = vunpack.c.l.b16 %v149
    %v407 = vunpack.c.l.b16 %v150
    %v408 = vunpack.c.l.b16 %v151
    %v409 = vunpack.c.l.b16 %v152
    %v410 = vunpack.c.l.b16 %v153
    %v411 = vunpack.c.l.b16 %v154
    %v412 = vunpack.c.l.b16 %v155
    %v413 = vunpack.c.l.b16 %v156
    %v414 = vunpack.c.l.b16 %v157
    %v415 = vunpack.c.l.b16 %v158
    %v416 = vunpack.c.l.b16 %v159
    %v417 = vunpack.c.l.b16 %v160
    %v418 = vunpack.c.l.b16 %v161
    %v419 = vunpack.c.l.b16 %v162
    %v420 = vunpack.c.l.b16 %v163
    %v421 = vunpack.c.l.b16 %v164
    %v422 = vunpack.c.l.b16 %v165
    %v423 = vunpack.c.l.b16 %v166
    %v424 = vunpack.c.l.b16 %v167
    %v425 = vunpack.c.l.b16 %v168
    %v426 = vunpack.c.l.b16 %v169
    %v427 = vunpack.c.l.b16 %v170
    %v428 = vunpack.c.l.b16 %v171
    %v429 = vunpack.c.l.b16 %v172
    %v430 = vunpack.c.l.b16 %v173
    %v431 = vunpack.c.l.b16 %v174
    %v432 = vunpack.c.l.b16 %v175
    %v433 = vunpack.c.l.b16 %v176
    %v434 = vunpack.c.l.b16 %v177
    %v435 = vunpack.c.l.b16 %v178
    %v436 = vunpack.c.l.b16 %v179
    %v437 = vunpack.c.l.b16 %v180
    %v438 = vunpack.c.l.b16 %v181
    %v439 = vunpack.c.l.b16 %v182
    %v440 = vunpack.c.l.b16 %v183
    %v441 = vunpack.c.l.b16 %v184
    %v442 = vunpack.c.l.b16 %v185
    %v443 = vunpack.c.l.b16 %v186
    %v444 = vunpack.c.l.b16 %v187
    %v445 = vunpack.c.l.b16 %v188
    %v446 = vunpack.c.l.b16 %v189
    %v447 = vunpack.c.l.b16 %v190
    %v448 = vunpack.c.l.b16 %v191
    %v449 = vunpack.c.l.b16 %v192
    %v450 = vunpack.c.l.b16 %v193
    %v451 = vunpack.c.l.b16 %v194
    %v452 = vunpack.c.l.b16 %v195
    %v453 = vunpack.c.l.b16 %v196
    %v454 = vunpack.c.l.b16 %v197
    %v455 = vunpack.c.l.b16 %v198
    %v456 = vunpack.c.l.b16 %v199
    %v457 = vunpack.c.l.b16 %v200
    %v458 = vunpack.c.l.b16 %v201
    %v459 = vunpack.c.l.b16 %v202
    %v460 = vunpack.c.l.b16 %v203
    %v461 = vunpack.c.l.b16 %v204
    %v462 = vunpack.c.l.b16 %v205
    %v463 = vunpack.c.l.b16 %v206
    %v464 = vunpack.c.l.b16 %v207
    %v465 = vunpack.c.l.b16 %v208
    %v466 = vunpack.c.l.b16 %v209
    %v467 = vunpack.c.l.b16 %v210
    %v468 = vunpack.c.l.b16 %v211
    %v469 = vunpack.c.l.b16 %v212
    %v470 = vunpack.c.l.b16 %v213
    %v471 = vunpack.c.l.b16 %v214
    %v472 = vunpack.c.l.b16 %v215
    %v473 = vunpack.c.l.b16 %v216
    %v474 = vunpack.c.l.b16 %v217
    %v475 = vunpack.c.l.b16 %v218
    %v476 = vunpack.c.l.b16 %v219
    %v477 = vunpack.c.l.b16 %v220
    %v478 = vunpack.c.l.b16 %v221
    %v479 = vunpack.c.l.b16 %v222
    %v480 = vunpack.c.l.b16 %v223
    %v481 = vunpack.c.l.b16 %v224
    %v482 = vunpack.c.l.b16 %v225
    %v483 = vunpack.c.l.b16 %v226
    %v484 = vunpack.c.l.b16 %v227
    %v485 = vunpack.c.l.b16 %v228
    %v486 = vunpack.c.l.b16 %v229
    %v487 = vunpack.c.l.b16 %v230
    %v488 = vunpack.c.l.b16 %v231
    %v489 = vunpack.c.l.b16 %v232
    %v490 = vunpack.c.l.b16 %v233
    %v491 = vunpack.c.l.b16 %v234
    %v492 = vunpack.c.l.b16 %v235
    %v493 = vpack.c.b16 %v366, %v365
    %v494 = vpack.c.b16 %v368, %v367
    %v495 = vpack.c.b16 %v370, %v369
    %v496 = vpack.c.b16 %v372, %v371
    %v497 = vpack.c.b16 %v374, %v373
    %v498 = vpack.c.b16 %v376, %v375
    %v499 = vpack.c.b16 %v378, %v377
    %v500 = vpack.c.b16 %v380, %v379
    %v501 = vpack.c.b16 %v382, %v381
    %v502 = vpack.c.b16 %v384, %v383
    %v503 = vpack.c.b16 %v386, %v385
    %v504 = vpack.c.b16 %v388, %v387
    %v505 = vpack.c.b16 %v390, %v389
    %v506 = vpack.c.b16 %v392, %v391
    %v507 = vpack.c.b16 %v394, %v393
    %v508 = vpack.c.b16 %v396, %v395
    %v509 = vpack.c.b16 %v398, %v397
    %v510 = vpack.c.b16 %v400, %v399
    %v511 = vpack.c.b16 %v402, %v401
    %v512 = vpack.c.b16 %v404, %v403
    %v513 = vpack.c.b16 %v406, %v405
    %v514 = vpack.c.b16 %v408, %v407
    %v515 = vpack.c.b16 %v410, %v409
    %v516 = vpack.c.b16 %v412, %v411
    %v517 = vpack.c.b16 %v414, %v413
    %v518 = vpack.c.b16 %v416, %v415
    %v519 = vpack.c.b16 %v418, %v417
    %v520 = vpack.c.b16 %v420, %v419
    %v521 = vpack.c.b16 %v422, %v421
    %v522 = vpack.c.b16 %v424, %v423
    %v523 = vpack.c.b16 %v426, %v425
    %v524 = vpack.c.b16 %v428, %v427
    %v525 = vpack.c.b16 %v430, %v429
    %v526 = vpack.c.b16 %v432, %v431
    %v527 = vpack.c.b16 %v434, %v433
    %v528 = vpack.c.b16 %v436, %v435
    %v529 = vpack.c.b16 %v438, %v437
    %v530 = vpack.c.b16 %v440, %v439
    %v531 = vpack.c.b16 %v442, %v441
    %v532 = vpack.c.b16 %v444, %v443
    %v533 = vpack.c.b16 %v446, %v445
    %v534 = vpack.c.b16 %v448, %v447
    %v535 = vpack.c.b16 %v450, %v449
    %v536 = vpack.c.b16 %v452, %v451
    %v537 = vpack.c.b16 %v454, %v453
    %v538 = vpack.c.b16 %v456, %v455
    %v539 = vpack.c.b16 %v458, %v457
    %v540 = vpack.c.b16 %v460, %v459
    %v541 = vpack.c.b16 %v462, %v461
    %v542 = vpack.c.b16 %v464, %v463
    %v543 = vpack.c.b16 %v466, %v465
    %v544 = vpack.c.b16 %v468, %v467
    %v545 = vpack.c.b16 %v470, %v469
    %v546 = vpack.c.b16 %v472, %v471
    %v547 = vpack.c.b16 %v474, %v473
    %v548 = vpack.c.b16 %v476, %v475
    %v549 = vpack.c.b16 %v478, %v477
    %v550 = vpack.c.b16 %v480, %v479
    %v551 = vpack.c.b16 %v482, %v481
    %v552 = vpack.c.b16 %v484, %v483
    %v553 = vpack.c.b16 %v486, %v485
    %v554 = vpack.c.b16 %v488, %v487
    %v555 = vpack.c.b16 %v490, %v489
    %v556 = vpack.c.b16 %v492, %v491
    %621 = vmatprep.subr.bf16.mxu0 0
    %622 = vmatpush1.bf16.msra.mxu0 %v493
    %623 = vmatprep.subr.bf16.mxu0 0
    %624 = vmatpush1.bf16.msra.mxu0 %v494
    %625 = vmatprep.subr.bf16.mxu0 0
    %626 = vmatpush1.bf16.msra.mxu0 %v495
    %627 = vmatprep.subr.bf16.mxu0 0
    %628 = vmatpush1.bf16.msra.mxu0 %v496
    %629 = vmatprep.subr.bf16.mxu0 0
    %630 = vmatpush1.bf16.msra.mxu0 %v497
    %631 = vmatprep.subr.bf16.mxu0 0
    %632 = vmatpush1.bf16.msra.mxu0 %v498
    %633 = vmatprep.subr.bf16.mxu0 0
    %634 = vmatpush1.bf16.msra.mxu0 %v499
    %635 = vmatprep.subr.bf16.mxu0 0
    %636 = vmatpush1.bf16.msra.mxu0 %v500
    %637 = vmatprep.subr.bf16.mxu0 0
    %638 = vmatpush1.bf16.msra.mxu0 %v501
    %639 = vmatprep.subr.bf16.mxu0 0
    %640 = vmatpush1.bf16.msra.mxu0 %v502
    %641 = vmatprep.subr.bf16.mxu0 0
    %642 = vmatpush1.bf16.msra.mxu0 %v503
    %643 = vmatprep.subr.bf16.mxu0 0
    %644 = vmatpush1.bf16.msra.mxu0 %v504
    %645 = vmatprep.subr.bf16.mxu0 0
    %646 = vmatpush1.bf16.msra.mxu0 %v505
    %647 = vmatprep.subr.bf16.mxu0 0
    %648 = vmatpush1.bf16.msra.mxu0 %v506
    %649 = vmatprep.subr.bf16.mxu0 0
    %650 = vmatpush1.bf16.msra.mxu0 %v507
    %651 = vmatprep.subr.bf16.mxu0 0
    %652 = vmatpush1.bf16.msra.mxu0 %v508
    %653 = vmatprep.mubr.bf16.mxu0 %v101
    %654 = vmatmul.mubr.bf16.gmra.mrb[0].mxu0 %v100
    %v655 = vpop.f32.mrb[0].mxu0
    %v656 = vadd.f32 0.0, %v655
    %v657 = vpop.f32.mrb[0].mxu0
    %v658 = vpop.f32.mrb[0].mxu0
    %v659 = vpop.f32.mrb[0].mxu0
    %660 = vdwg.mxu0
    %661 = vmatprep.subr.bf16.mxu0 0
    %662 = vmatpush1.bf16.msra.mxu0 %v509
    %663 = vmatprep.subr.bf16.mxu0 0
    %664 = vmatpush1.bf16.msra.mxu0 %v510
    %665 = vmatprep.subr.bf16.mxu0 0
    %666 = vmatpush1.bf16.msra.mxu0 %v511
    %667 = vmatprep.subr.bf16.mxu0 0
    %668 = vmatpush1.bf16.msra.mxu0 %v512
    %669 = vmatprep.subr.bf16.mxu0 0
    %670 = vmatpush1.bf16.msra.mxu0 %v513
    %671 = vmatprep.subr.bf16.mxu0 0
    %672 = vmatpush1.bf16.msra.mxu0 %v514
    %673 = vmatprep.subr.bf16.mxu0 0
    %674 = vmatpush1.bf16.msra.mxu0 %v515
    %675 = vmatprep.subr.bf16.mxu0 0
    %676 = vmatpush1.bf16.msra.mxu0 %v516
    %677 = vmatprep.subr.bf16.mxu0 0
    %678 = vmatpush1.bf16.msra.mxu0 %v517
    %679 = vmatprep.subr.bf16.mxu0 0
    %680 = vmatpush1.bf16.msra.mxu0 %v518
    %681 = vmatprep.subr.bf16.mxu0 0
    %682 = vmatpush1.bf16.msra.mxu0 %v519
    %683 = vmatprep.subr.bf16.mxu0 0
    %684 = vmatpush1.bf16.msra.mxu0 %v520
    %685 = vmatprep.subr.bf16.mxu0 0
    %686 = vmatpush1.bf16.msra.mxu0 %v521
    %687 = vmatprep.subr.bf16.mxu0 0
    %688 = vmatpush1.bf16.msra.mxu0 %v522
    %689 = vmatprep.subr.bf16.mxu0 0
    %690 = vmatpush1.bf16.msra.mxu0 %v523
    %691 = vmatprep.subr.bf16.mxu0 0
    %692 = vmatpush1.bf16.msra.mxu0 %v524
    %693 = vmatprep.mubr.bf16.mxu0 %v103
    %694 = vmatmul.mubr.bf16.gmra.mrb[0].mxu0 %v102
    %v695 = vpop.f32.mrb[0].mxu0
    %v696 = vadd.f32 %v656, %v695
    %v697 = vpop.f32.mrb[0].mxu0
    %v698 = vpop.f32.mrb[0].mxu0
    %v699 = vpop.f32.mrb[0].mxu0
    %700 = vdwg.mxu0
    %701 = vmatprep.subr.bf16.mxu0 0
    %702 = vmatpush1.bf16.msra.mxu0 %v525
    %703 = vmatprep.subr.bf16.mxu0 0
    %704 = vmatpush1.bf16.msra.mxu0 %v526
    %705 = vmatprep.subr.bf16.mxu0 0
    %706 = vmatpush1.bf16.msra.mxu0 %v527
    %707 = vmatprep.subr.bf16.mxu0 0
    %708 = vmatpush1.bf16.msra.mxu0 %v528
    %709 = vmatprep.subr.bf16.mxu0 0
    %710 = vmatpush1.bf16.msra.mxu0 %v529
    %711 = vmatprep.subr.bf16.mxu0 0
    %712 = vmatpush1.bf16.msra.mxu0 %v530
    %713 = vmatprep.subr.bf16.mxu0 0
    %714 = vmatpush1.bf16.msra.mxu0 %v531
    %715 = vmatprep.subr.bf16.mxu0 0
    %716 = vmatpush1.bf16.msra.mxu0 %v532
    %717 = vmatprep.subr.bf16.mxu0 0
    %718 = vmatpush1.bf16.msra.mxu0 %v533
    %719 = vmatprep.subr.bf16.mxu0 0
    %720 = vmatpush1.bf16.msra.mxu0 %v534
    %721 = vmatprep.subr.bf16.mxu0 0
    %722 = vmatpush1.bf16.msra.mxu0 %v535
    %723 = vmatprep.subr.bf16.mxu0 0
    %724 = vmatpush1.bf16.msra.mxu0 %v536
    %725 = vmatprep.subr.bf16.mxu0 0
    %726 = vmatpush1.bf16.msra.mxu0 %v537
    %727 = vmatprep.subr.bf16.mxu0 0
    %728 = vmatpush1.bf16.msra.mxu0 %v538
    %729 = vmatprep.subr.bf16.mxu0 0
    %730 = vmatpush1.bf16.msra.mxu0 %v539
    %731 = vmatprep.subr.bf16.mxu0 0
    %732 = vmatpush1.bf16.msra.mxu0 %v540
    %733 = vmatprep.mubr.bf16.mxu0 %v105
    %734 = vmatmul.mubr.bf16.gmra.mrb[0].mxu0 %v104
    %v735 = vpop.f32.mrb[0].mxu0
    %v736 = vadd.f32 %v696, %v735
    %v737 = vpop.f32.mrb[0].mxu0
    %v738 = vpop.f32.mrb[0].mxu0
    %v739 = vpop.f32.mrb[0].mxu0
    %740 = vdwg.mxu0
    %741 = vmatprep.subr.bf16.mxu0 0
    %742 = vmatpush1.bf16.msra.mxu0 %v541
    %743 = vmatprep.subr.bf16.mxu0 0
    %744 = vmatpush1.bf16.msra.mxu0 %v542
    %745 = vmatprep.subr.bf16.mxu0 0
    %746 = vmatpush1.bf16.msra.mxu0 %v543
    %747 = vmatprep.subr.bf16.mxu0 0
    %748 = vmatpush1.bf16.msra.mxu0 %v544
    %749 = vmatprep.subr.bf16.mxu0 0
    %750 = vmatpush1.bf16.msra.mxu0 %v545
    %751 = vmatprep.subr.bf16.mxu0 0
    %752 = vmatpush1.bf16.msra.mxu0 %v546
    %753 = vmatprep.subr.bf16.mxu0 0
    %754 = vmatpush1.bf16.msra.mxu0 %v547
    %755 = vmatprep.subr.bf16.mxu0 0
    %756 = vmatpush1.bf16.msra.mxu0 %v548
    %757 = vmatprep.subr.bf16.mxu0 0
    %758 = vmatpush1.bf16.msra.mxu0 %v549
    %759 = vmatprep.subr.bf16.mxu0 0
    %760 = vmatpush1.bf16.msra.mxu0 %v550
    %761 = vmatprep.subr.bf16.mxu0 0
    %762 = vmatpush1.bf16.msra.mxu0 %v551
    %763 = vmatprep.subr.bf16.mxu0 0
    %764 = vmatpush1.bf16.msra.mxu0 %v552
    %765 = vmatprep.subr.bf16.mxu0 0
    %766 = vmatpush1.bf16.msra.mxu0 %v553
    %767 = vmatprep.subr.bf16.mxu0 0
    %768 = vmatpush1.bf16.msra.mxu0 %v554
    %769 = vmatprep.subr.bf16.mxu0 0
    %770 = vmatpush1.bf16.msra.mxu0 %v555
    %771 = vmatprep.subr.bf16.mxu0 0
    %772 = vmatpush1.bf16.msra.mxu0 %v556
    %773 = vmatprep.mubr.bf16.mxu0 %v107
    %774 = vmatmul.mubr.bf16.gmra.mrb[0].mxu0 %v106
    %v775 = vpop.f32.mrb[0].mxu0
    %v776 = vadd.f32 %v736, %v775
    %v777 = vpop.f32.mrb[0].mxu0
    %v778 = vpop.f32.mrb[0].mxu0
    %v779 = vpop.f32.mrb[0].mxu0
    %780 = vdwg.mxu0
    %v781 = vadd.f32 %v236, %v776
    %782 = vst [vmem:[#allocation7] sm:$0x3] %v781
    // Predicated region
    $region26: #{tpu_custom_call.1} parent=1 // pred_check
      %p783 = pneg %p42
    $region27: #{tpu_custom_call.1} parent=1 // pred_check_branch
      %785 = sbr.rel (%p783) target = $region29
    $region28: #{tpu_custom_call.1} parent=1 // pred_region
      %v786 = vld [vmem:[#allocation7] sm:$0x3]
      %vm787 = vcmask 1041408
      %v788 = vsel %vm787, %v786, -inf
      %789 = vmax.xlane.f32.xlu0 %v788
      %v790 = vpop.xlane.xlu0 %789
      %v791 = vsub.f32 %v786, %v790
      %v792 = vmul.f32 %v791, 1.442695
      %v793 = vpow.pop %v792
      %v794 = vsel %vm787, %v793, 0.0
      %795 = vadd.xlane.f32.xlu0 %v794
      %v796 = vpop.xlane.xlu0 %795
      %v797 = vrcp.pop %v796
      %v798 = vmul.f32 %v793, %v797
      %799 = vst [vmem:[#allocation7] sm:$0x3] %v798
    $region29: #{tpu_custom_call.1} parent=1 // pred_fallthru
      _
    // Predicated region
    $region30: #{tpu_custom_call.1} parent=1 // pred_check
      _
    $region31: #{tpu_custom_call.1} parent=1 // pred_check_branch
      %801 = sbr.rel (0) target = $region33
    $region32: #{tpu_custom_call.1} parent=1 // pred_region
      %s803 = ssub.s32 32, 32
      %804 = vsyncadd [#allocation4], %s803
      %s806 = sshll.u32 [#allocation7], 4
      %s807 = int_to_ptr.vmem [resolvable:$true] %s806
      %809 = dma.vmem_to_hbm [thread:$0]  %s807, 32, %s3, [#allocation4]
    $region33: #{tpu_custom_call.1} parent=1 // pred_fallthru
      _
    // Predicated region
    $region34: #{tpu_custom_call.1} parent=1 // pred_check
      _
    $region35: #{tpu_custom_call.1} parent=1 // pred_check_branch
      %811 = sbr.rel (0) target = $region37
    $region36: #{tpu_custom_call.1} parent=1 // pred_region
      %812 = dma.done [#allocation4], 32
    $region37: #{tpu_custom_call.1} parent=1 // pred_fallthru
      _
    %813 = vsyncpa [#allocation3], 1
    %814 = vsyncpa [#allocation6], 1
    %815 = vsyncpa [#allocation4], 1

</llo_original>
